<compile_context>
chip_gen: v5e
topology: v5e:2x2
jax: 0.10.0
libtpu: 0.0.40
codegen_flags: <defaults>
</compile_context>

<pallas_src>
import functools
import math

import jax
import jax.numpy as jnp
from jax.experimental import pallas as pl
from jax.experimental.pallas import tpu as pltpu


def mha_kernel(q_ref, k_ref, v_ref, wqkv_ref, bqkv_ref, wc_ref, bc_ref, o_ref,
               *, n_head):
    # q_ref/k_ref/v_ref: (B, L, D) inputs to the q / k / v projections
    # wqkv_ref: (D, 3D)  columns [0:D | D:2D | 2D:3D] = Wq^T | Wk^T | Wv^T
    # bqkv_ref: (3, D)   rows = bq, bk, bv
    # wc_ref:   (D, D)   Wc^T, i.e. (in, out) layout
    # bc_ref:   (1, D)
    batch, seq_len, d_model = q_ref.shape
    d_head = d_model // n_head
    bl = batch * seq_len
    scale = 1.0 / math.sqrt(d_head)

    # --- fused QKV projection: one plain 2-D MXU pass over stacked inputs. ---
    x = jnp.concatenate(
        [q_ref[...].reshape(bl, d_model),
         k_ref[...].reshape(bl, d_model),
         v_ref[...].reshape(bl, d_model)], axis=0)                 # (3BL, D)
    y = jnp.dot(x, wqkv_ref[...],
                preferred_element_type=jnp.float32)                # (3BL, 3D)

    # Only the diagonal (rows, cols) blocks are live; each gets its own bias.
    qf = (y[0:bl, 0:d_model]
          + bqkv_ref[0:1, :]).reshape(batch, seq_len, d_model)
    kf = (y[bl:2 * bl, d_model:2 * d_model]
          + bqkv_ref[1:2, :]).reshape(batch, seq_len, d_model)
    vf = (y[2 * bl:3 * bl, 2 * d_model:3 * d_model]
          + bqkv_ref[2:3, :]).reshape(batch, seq_len, d_model)

    # --- per-head scaled dot-product attention (exact softmax). ---
    # TODO(synk): optional attention mask (mask==0 -> -10000) not wired in;
    # this matches the PyTorch module's default path (mask=None).
    head_outs = []
    for h in range(n_head):
        lo = h * d_head
        qh = qf[:, :, lo:lo + d_head]                              # (B, L, dh)
        kh = kf[:, :, lo:lo + d_head]
        vh = vf[:, :, lo:lo + d_head]
        # q @ k^T per batch, contracting last dims (no transpose materialized).
        score = jnp.einsum("bld,bmd->blm", qh, kh,
                           preferred_element_type=jnp.float32) * scale
        m = jnp.max(score, axis=-1, keepdims=True)
        e = jnp.exp(score - m)
        p = e / jnp.sum(e, axis=-1, keepdims=True)                 # softmax(-1)
        head_outs.append(jnp.einsum("blm,bmd->bld", p, vh,
                                    preferred_element_type=jnp.float32))

    # --- concat heads along lanes, ONE output-projection matmul. ---
    concat = jnp.concatenate(head_outs, axis=-1).reshape(bl, d_model)  # (BL, D)
    out = jnp.dot(concat, wc_ref[...],
                  preferred_element_type=jnp.float32) + bc_ref[...]
    o_ref[...] = out.reshape(batch, seq_len, d_model).astype(o_ref.dtype)


def pack_mha_params(params):
    """One-time (init-time) packing of the PyTorch-layout weights."""
    wq, bq, wk, bk, wv, bv, wc, bc = params
    d_model = wq.shape[0]
    w_qkv = jnp.concatenate([wq.T, wk.T, wv.T], axis=1)      # (D, 3D), (in,out)
    b_qkv = jnp.stack([bq, bk, bv], axis=0)                  # (3, D)
    wc_t = wc.T                                              # (D, D),  (in,out)
    bc_r = bc.reshape(1, d_model)                            # (1, D)
    return w_qkv, b_qkv, wc_t, bc_r


@functools.partial(jax.jit, static_argnums=(4,))
def multi_head_attention(q, k, v, packed_params, n_head):
    """Per-call wrapper: nothing but the pallas_call itself."""
    B, L, D = q.shape
    w_qkv, b_qkv, wc_t, bc_r = packed_params
    kernel = functools.partial(mha_kernel, n_head=n_head)
    vmem = pl.BlockSpec(memory_space=pltpu.MemorySpace.VMEM)
    return pl.pallas_call(
        kernel,
        out_shape=jax.ShapeDtypeStruct((B, L, D), q.dtype),
        in_specs=[vmem] * 7,
        out_specs=vmem,
    )(q, k, v, w_qkv, b_qkv, wc_t, bc_r)


def reference_mha(q, k, v, params, n_head):
    """Pure-JAX reference matching the PyTorch module (mask=None)."""
    wq, bq, wk, bk, wv, bv, wc, bc = params
    B, L, D = q.shape
    dh = D // n_head

    def lin(x, w, b):
        return x @ w.T + b

    Q = lin(q, wq, bq).reshape(B, L, n_head, dh).transpose(0, 2, 1, 3)
    K = lin(k, wk, bk).reshape(B, L, n_head, dh).transpose(0, 2, 1, 3)
    V = lin(v, wv, bv).reshape(B, L, n_head, dh).transpose(0, 2, 1, 3)

    score = jnp.einsum("bhld,bhmd->bhlm", Q, K) / math.sqrt(dh)
    p = jax.nn.softmax(score, axis=-1)
    out = jnp.einsum("bhlm,bhmd->bhld", p, V)
    out = out.transpose(0, 2, 1, 3).reshape(B, L, D)
    return lin(out, wc, bc)


if __name__ == "__main__":
    B, L, D, H = 2, 8, 32, 4  # batch, seq, d_model, n_head

    key = jax.random.PRNGKey(0)
    keys = jax.random.split(key, 11)
    bound = 1.0 / math.sqrt(D)

    def uinit(k_, shape):
        return jax.random.uniform(k_, shape, jnp.float32, -bound, bound)

    params = (
        uinit(keys[0], (D, D)), uinit(keys[1], (D,)),   # w_q
        uinit(keys[2], (D, D)), uinit(keys[3], (D,)),   # w_k
        uinit(keys[4], (D, D)), uinit(keys[5], (D,)),   # w_v
        uinit(keys[6], (D, D)), uinit(keys[7], (D,)),   # w_concat
    )

    q = jax.random.normal(keys[8], (B, L, D), jnp.float32)
    k = jax.random.normal(keys[9], (B, L, D), jnp.float32)
    v = jax.random.normal(keys[10], (B, L, D), jnp.float32)

    # Init-time weight packing (done once; not on the per-call path).
    packed = pack_mha_params(params)
    packed = jax.tree_util.tree_map(jax.block_until_ready, packed)

    out = multi_head_attention(q, k, v, packed, H)
    out = jax.block_until_ready(out)

    ref = reference_mha(q, k, v, params, H)
    assert out.shape == (B, L, D)
    # Exact softmax now; remaining slack only covers MXU-vs-XLA f32 matmul
    # accumulation-order/precision differences.
    assert jnp.allclose(out, ref, atol=2e-3, rtol=2e-3), "mismatch vs reference"

    print("KERNEL_OK")
</pallas_src>

<mosaic_0001>
module attributes {stable_mosaic.version = 11 : i64} {
  func.func @mha_kernel(%arg0: memref<2x8x32xf32, #tpu.memory_space<vmem>>, %arg1: memref<2x8x32xf32, #tpu.memory_space<vmem>>, %arg2: memref<2x8x32xf32, #tpu.memory_space<vmem>>, %arg3: memref<32x96xf32, #tpu.memory_space<vmem>>, %arg4: memref<3x32xf32, #tpu.memory_space<vmem>>, %arg5: memref<32x32xf32, #tpu.memory_space<vmem>>, %arg6: memref<1x32xf32, #tpu.memory_space<vmem>>, %arg7: memref<2x8x32xf32, #tpu.memory_space<vmem>>) attributes {dimension_semantics = [], scalar_prefetch = 0 : i64, scratch_operands = 0 : i64, tpu.core_type = #tpu.core_type<tc>} {
    %c0 = arith.constant 0 : index
    %c0_0 = arith.constant 0 : index
    %c0_1 = arith.constant 0 : index
    %0 = vector.load %arg0[%c0, %c0_0, %c0_1] : memref<2x8x32xf32, #tpu.memory_space<vmem>>, vector<2x8x32xf32>
    %1 = vector.shape_cast %0 : vector<2x8x32xf32> to vector<16x32xf32>
    %c0_2 = arith.constant 0 : index
    %c0_3 = arith.constant 0 : index
    %c0_4 = arith.constant 0 : index
    %2 = vector.load %arg1[%c0_2, %c0_3, %c0_4] : memref<2x8x32xf32, #tpu.memory_space<vmem>>, vector<2x8x32xf32>
    %3 = vector.shape_cast %2 : vector<2x8x32xf32> to vector<16x32xf32>
    %c0_5 = arith.constant 0 : index
    %c0_6 = arith.constant 0 : index
    %c0_7 = arith.constant 0 : index
    %4 = vector.load %arg2[%c0_5, %c0_6, %c0_7] : memref<2x8x32xf32, #tpu.memory_space<vmem>>, vector<2x8x32xf32>
    %5 = vector.shape_cast %4 : vector<2x8x32xf32> to vector<16x32xf32>
    %6 = tpu.concatenate %1, %3, %5 in 0 : vector<16x32xf32>, vector<16x32xf32>, vector<16x32xf32> -> vector<48x32xf32>
    %c0_8 = arith.constant 0 : index
    %c0_9 = arith.constant 0 : index
    %7 = vector.load %arg3[%c0_8, %c0_9] : memref<32x96xf32, #tpu.memory_space<vmem>>, vector<32x96xf32>
    %cst = arith.constant dense<0.000000e+00> : vector<48x96xf32>
    %8 = tpu.matmul %6, %7, %cst {dimension_numbers = #tpu.dot_dimension_numbers<[1], [0], [0], [1], [0, 0, 1, 1], [], []>} : vector<48x32xf32>, vector<32x96xf32>, vector<48x96xf32> -> vector<48x96xf32>
    %9 = vector.extract_strided_slice %8 {offsets = [0, 0], sizes = [16, 32], strides = [1, 1]} : vector<48x96xf32> to vector<16x32xf32>
    %c0_10 = arith.constant 0 : index
    %c0_11 = arith.constant 0 : index
    %10 = vector.load %arg4[%c0_10, %c0_11] : memref<3x32xf32, #tpu.memory_space<vmem>>, vector<1x32xf32>
    %11 = vector.broadcast %10 : vector<1x32xf32> to vector<16x32xf32>
    %12 = arith.addf %9, %11 : vector<16x32xf32>
    %13 = vector.shape_cast %12 : vector<16x32xf32> to vector<2x8x32xf32>
    %14 = vector.extract_strided_slice %8 {offsets = [16, 32], sizes = [16, 32], strides = [1, 1]} : vector<48x96xf32> to vector<16x32xf32>
    %c1 = arith.constant 1 : index
    %c0_12 = arith.constant 0 : index
    %15 = vector.load %arg4[%c1, %c0_12] : memref<3x32xf32, #tpu.memory_space<vmem>>, vector<1x32xf32>
    %16 = vector.broadcast %15 : vector<1x32xf32> to vector<16x32xf32>
    %17 = arith.addf %14, %16 : vector<16x32xf32>
    %18 = vector.shape_cast %17 : vector<16x32xf32> to vector<2x8x32xf32>
    %19 = vector.extract_strided_slice %8 {offsets = [32, 64], sizes = [16, 32], strides = [1, 1]} : vector<48x96xf32> to vector<16x32xf32>
    %c2 = arith.constant 2 : index
    %c0_13 = arith.constant 0 : index
    %20 = vector.load %arg4[%c2, %c0_13] : memref<3x32xf32, #tpu.memory_space<vmem>>, vector<1x32xf32>
    %21 = vector.broadcast %20 : vector<1x32xf32> to vector<16x32xf32>
    %22 = arith.addf %19, %21 : vector<16x32xf32>
    %23 = vector.shape_cast %22 : vector<16x32xf32> to vector<2x8x32xf32>
    %24 = vector.extract_strided_slice %13 {offsets = [0, 0, 0], sizes = [2, 8, 8], strides = [1, 1, 1]} : vector<2x8x32xf32> to vector<2x8x8xf32>
    %25 = vector.extract_strided_slice %18 {offsets = [0, 0, 0], sizes = [2, 8, 8], strides = [1, 1, 1]} : vector<2x8x32xf32> to vector<2x8x8xf32>
    %26 = vector.extract_strided_slice %23 {offsets = [0, 0, 0], sizes = [2, 8, 8], strides = [1, 1, 1]} : vector<2x8x32xf32> to vector<2x8x8xf32>
    "tpu.trace_start"() <{level = 10 : i32, message = "bld,bmd->blm"}> : () -> ()
    %cst_14 = arith.constant dense<0.000000e+00> : vector<2x8x8xf32>
    %27 = tpu.matmul %24, %25, %cst_14 {dimension_numbers = #tpu.dot_dimension_numbers<[2], [2], [1], [1], [0, 0, 0, 1, 1, 1], [0], [0]>} : vector<2x8x8xf32>, vector<2x8x8xf32>, vector<2x8x8xf32> -> vector<2x8x8xf32>
    "tpu.trace_stop"() : () -> ()
    %cst_15 = arith.constant 0.353553385 : f32
    %28 = vector.broadcast %cst_15 : f32 to vector<2x8x8xf32>
    %29 = arith.mulf %27, %28 : vector<2x8x8xf32>
    %cst_16 = arith.constant dense<0xFF800000> : vector<2x8xf32>
    %30 = vector.multi_reduction <maximumf>, %29, %cst_16 [2] : vector<2x8x8xf32> to vector<2x8xf32>
    %31 = vector.shape_cast %30 : vector<2x8xf32> to vector<2x8x1xf32>
    %32 = vector.broadcast %31 : vector<2x8x1xf32> to vector<2x8x8xf32>
    %33 = arith.subf %29, %32 : vector<2x8x8xf32>
    %34 = math.exp %33 : vector<2x8x8xf32>
    %cst_17 = arith.constant dense<0.000000e+00> : vector<2x8xf32>
    %35 = vector.multi_reduction <add>, %34, %cst_17 [2] : vector<2x8x8xf32> to vector<2x8xf32>
    %36 = vector.shape_cast %35 : vector<2x8xf32> to vector<2x8x1xf32>
    %37 = vector.broadcast %36 : vector<2x8x1xf32> to vector<2x8x8xf32>
    %38 = arith.divf %34, %37 : vector<2x8x8xf32>
    "tpu.trace_start"() <{level = 10 : i32, message = "blm,bmd->bld"}> : () -> ()
    %cst_18 = arith.constant dense<0.000000e+00> : vector<2x8x8xf32>
    %39 = tpu.matmul %38, %26, %cst_18 {dimension_numbers = #tpu.dot_dimension_numbers<[2], [1], [1], [2], [0, 0, 0, 1, 1, 2], [0], [0]>} : vector<2x8x8xf32>, vector<2x8x8xf32>, vector<2x8x8xf32> -> vector<2x8x8xf32>
    "tpu.trace_stop"() : () -> ()
    %40 = vector.extract_strided_slice %13 {offsets = [0, 0, 8], sizes = [2, 8, 8], strides = [1, 1, 1]} : vector<2x8x32xf32> to vector<2x8x8xf32>
    %41 = vector.extract_strided_slice %18 {offsets = [0, 0, 8], sizes = [2, 8, 8], strides = [1, 1, 1]} : vector<2x8x32xf32> to vector<2x8x8xf32>
    %42 = vector.extract_strided_slice %23 {offsets = [0, 0, 8], sizes = [2, 8, 8], strides = [1, 1, 1]} : vector<2x8x32xf32> to vector<2x8x8xf32>
    "tpu.trace_start"() <{level = 10 : i32, message = "bld,bmd->blm"}> : () -> ()
    %cst_19 = arith.constant dense<0.000000e+00> : vector<2x8x8xf32>
    %43 = tpu.matmul %40, %41, %cst_19 {dimension_numbers = #tpu.dot_dimension_numbers<[2], [2], [1], [1], [0, 0, 0, 1, 1, 1], [0], [0]>} : vector<2x8x8xf32>, vector<2x8x8xf32>, vector<2x8x8xf32> -> vector<2x8x8xf32>
    "tpu.trace_stop"() : () -> ()
    %cst_20 = arith.constant 0.353553385 : f32
    %44 = vector.broadcast %cst_20 : f32 to vector<2x8x8xf32>
    %45 = arith.mulf %43, %44 : vector<2x8x8xf32>
    %cst_21 = arith.constant dense<0xFF800000> : vector<2x8xf32>
    %46 = vector.multi_reduction <maximumf>, %45, %cst_21 [2] : vector<2x8x8xf32> to vector<2x8xf32>
    %47 = vector.shape_cast %46 : vector<2x8xf32> to vector<2x8x1xf32>
    %48 = vector.broadcast %47 : vector<2x8x1xf32> to vector<2x8x8xf32>
    %49 = arith.subf %45, %48 : vector<2x8x8xf32>
    %50 = math.exp %49 : vector<2x8x8xf32>
    %cst_22 = arith.constant dense<0.000000e+00> : vector<2x8xf32>
    %51 = vector.multi_reduction <add>, %50, %cst_22 [2] : vector<2x8x8xf32> to vector<2x8xf32>
    %52 = vector.shape_cast %51 : vector<2x8xf32> to vector<2x8x1xf32>
    %53 = vector.broadcast %52 : vector<2x8x1xf32> to vector<2x8x8xf32>
    %54 = arith.divf %50, %53 : vector<2x8x8xf32>
    "tpu.trace_start"() <{level = 10 : i32, message = "blm,bmd->bld"}> : () -> ()
    %cst_23 = arith.constant dense<0.000000e+00> : vector<2x8x8xf32>
    %55 = tpu.matmul %54, %42, %cst_23 {dimension_numbers = #tpu.dot_dimension_numbers<[2], [1], [1], [2], [0, 0, 0, 1, 1, 2], [0], [0]>} : vector<2x8x8xf32>, vector<2x8x8xf32>, vector<2x8x8xf32> -> vector<2x8x8xf32>
    "tpu.trace_stop"() : () -> ()
    %56 = vector.extract_strided_slice %13 {offsets = [0, 0, 16], sizes = [2, 8, 8], strides = [1, 1, 1]} : vector<2x8x32xf32> to vector<2x8x8xf32>
    %57 = vector.extract_strided_slice %18 {offsets = [0, 0, 16], sizes = [2, 8, 8], strides = [1, 1, 1]} : vector<2x8x32xf32> to vector<2x8x8xf32>
    %58 = vector.extract_strided_slice %23 {offsets = [0, 0, 16], sizes = [2, 8, 8], strides = [1, 1, 1]} : vector<2x8x32xf32> to vector<2x8x8xf32>
    "tpu.trace_start"() <{level = 10 : i32, message = "bld,bmd->blm"}> : () -> ()
    %cst_24 = arith.constant dense<0.000000e+00> : vector<2x8x8xf32>
    %59 = tpu.matmul %56, %57, %cst_24 {dimension_numbers = #tpu.dot_dimension_numbers<[2], [2], [1], [1], [0, 0, 0, 1, 1, 1], [0], [0]>} : vector<2x8x8xf32>, vector<2x8x8xf32>, vector<2x8x8xf32> -> vector<2x8x8xf32>
    "tpu.trace_stop"() : () -> ()
    %cst_25 = arith.constant 0.353553385 : f32
    %60 = vector.broadcast %cst_25 : f32 to vector<2x8x8xf32>
    %61 = arith.mulf %59, %60 : vector<2x8x8xf32>
    %cst_26 = arith.constant dense<0xFF800000> : vector<2x8xf32>
    %62 = vector.multi_reduction <maximumf>, %61, %cst_26 [2] : vector<2x8x8xf32> to vector<2x8xf32>
    %63 = vector.shape_cast %62 : vector<2x8xf32> to vector<2x8x1xf32>
    %64 = vector.broadcast %63 : vector<2x8x1xf32> to vector<2x8x8xf32>
    %65 = arith.subf %61, %64 : vector<2x8x8xf32>
    %66 = math.exp %65 : vector<2x8x8xf32>
    %cst_27 = arith.constant dense<0.000000e+00> : vector<2x8xf32>
    %67 = vector.multi_reduction <add>, %66, %cst_27 [2] : vector<2x8x8xf32> to vector<2x8xf32>
    %68 = vector.shape_cast %67 : vector<2x8xf32> to vector<2x8x1xf32>
    %69 = vector.broadcast %68 : vector<2x8x1xf32> to vector<2x8x8xf32>
    %70 = arith.divf %66, %69 : vector<2x8x8xf32>
    "tpu.trace_start"() <{level = 10 : i32, message = "blm,bmd->bld"}> : () -> ()
    %cst_28 = arith.constant dense<0.000000e+00> : vector<2x8x8xf32>
    %71 = tpu.matmul %70, %58, %cst_28 {dimension_numbers = #tpu.dot_dimension_numbers<[2], [1], [1], [2], [0, 0, 0, 1, 1, 2], [0], [0]>} : vector<2x8x8xf32>, vector<2x8x8xf32>, vector<2x8x8xf32> -> vector<2x8x8xf32>
    "tpu.trace_stop"() : () -> ()
    %72 = vector.extract_strided_slice %13 {offsets = [0, 0, 24], sizes = [2, 8, 8], strides = [1, 1, 1]} : vector<2x8x32xf32> to vector<2x8x8xf32>
    %73 = vector.extract_strided_slice %18 {offsets = [0, 0, 24], sizes = [2, 8, 8], strides = [1, 1, 1]} : vector<2x8x32xf32> to vector<2x8x8xf32>
    %74 = vector.extract_strided_slice %23 {offsets = [0, 0, 24], sizes = [2, 8, 8], strides = [1, 1, 1]} : vector<2x8x32xf32> to vector<2x8x8xf32>
    "tpu.trace_start"() <{level = 10 : i32, message = "bld,bmd->blm"}> : () -> ()
    %cst_29 = arith.constant dense<0.000000e+00> : vector<2x8x8xf32>
    %75 = tpu.matmul %72, %73, %cst_29 {dimension_numbers = #tpu.dot_dimension_numbers<[2], [2], [1], [1], [0, 0, 0, 1, 1, 1], [0], [0]>} : vector<2x8x8xf32>, vector<2x8x8xf32>, vector<2x8x8xf32> -> vector<2x8x8xf32>
    "tpu.trace_stop"() : () -> ()
    %cst_30 = arith.constant 0.353553385 : f32
    %76 = vector.broadcast %cst_30 : f32 to vector<2x8x8xf32>
    %77 = arith.mulf %75, %76 : vector<2x8x8xf32>
    %cst_31 = arith.constant dense<0xFF800000> : vector<2x8xf32>
    %78 = vector.multi_reduction <maximumf>, %77, %cst_31 [2] : vector<2x8x8xf32> to vector<2x8xf32>
    %79 = vector.shape_cast %78 : vector<2x8xf32> to vector<2x8x1xf32>
    %80 = vector.broadcast %79 : vector<2x8x1xf32> to vector<2x8x8xf32>
    %81 = arith.subf %77, %80 : vector<2x8x8xf32>
    %82 = math.exp %81 : vector<2x8x8xf32>
    %cst_32 = arith.constant dense<0.000000e+00> : vector<2x8xf32>
    %83 = vector.multi_reduction <add>, %82, %cst_32 [2] : vector<2x8x8xf32> to vector<2x8xf32>
    %84 = vector.shape_cast %83 : vector<2x8xf32> to vector<2x8x1xf32>
    %85 = vector.broadcast %84 : vector<2x8x1xf32> to vector<2x8x8xf32>
    %86 = arith.divf %82, %85 : vector<2x8x8xf32>
    "tpu.trace_start"() <{level = 10 : i32, message = "blm,bmd->bld"}> : () -> ()
    %cst_33 = arith.constant dense<0.000000e+00> : vector<2x8x8xf32>
    %87 = tpu.matmul %86, %74, %cst_33 {dimension_numbers = #tpu.dot_dimension_numbers<[2], [1], [1], [2], [0, 0, 0, 1, 1, 2], [0], [0]>} : vector<2x8x8xf32>, vector<2x8x8xf32>, vector<2x8x8xf32> -> vector<2x8x8xf32>
    "tpu.trace_stop"() : () -> ()
    %88 = tpu.concatenate %39, %55, %71, %87 in 2 : vector<2x8x8xf32>, vector<2x8x8xf32>, vector<2x8x8xf32>, vector<2x8x8xf32> -> vector<2x8x32xf32>
    %89 = vector.shape_cast %88 : vector<2x8x32xf32> to vector<16x32xf32>
    %c0_34 = arith.constant 0 : index
    %c0_35 = arith.constant 0 : index
    %90 = vector.load %arg5[%c0_34, %c0_35] : memref<32x32xf32, #tpu.memory_space<vmem>>, vector<32x32xf32>
    %cst_36 = arith.constant dense<0.000000e+00> : vector<16x32xf32>
    %91 = tpu.matmul %89, %90, %cst_36 {dimension_numbers = #tpu.dot_dimension_numbers<[1], [0], [0], [1], [0, 0, 1, 1], [], []>} : vector<16x32xf32>, vector<32x32xf32>, vector<16x32xf32> -> vector<16x32xf32>
    %c0_37 = arith.constant 0 : index
    %c0_38 = arith.constant 0 : index
    %92 = vector.load %arg6[%c0_37, %c0_38] : memref<1x32xf32, #tpu.memory_space<vmem>>, vector<1x32xf32>
    %93 = vector.broadcast %92 : vector<1x32xf32> to vector<16x32xf32>
    %94 = arith.addf %91, %93 : vector<16x32xf32>
    %95 = vector.shape_cast %94 : vector<16x32xf32> to vector<2x8x32xf32>
    %c0_39 = arith.constant 0 : index
    %c0_40 = arith.constant 0 : index
    %c0_41 = arith.constant 0 : index
    %96 = vector.load %arg7[%c0_39, %c0_40, %c0_41] : memref<2x8x32xf32, #tpu.memory_space<vmem>>, vector<2x8x32xf32>
    tpu.vector_store %arg7[%c0_39, %c0_40, %c0_41], %95 {strides = array<i32>} : memref<2x8x32xf32, #tpu.memory_space<vmem>>, vector<2x8x32xf32>,
    return
  }
}

</mosaic_0001>

<llo_original>
// kernel: multi_head_attention.1
$region0: #{multi_head_attention.1}
  #allocation0 [shape = 'u32[]', space=smem, size = 0x4, offset = 0x4, fixed_abs, tag = 'smem constant byte address 0x4 - core index']
  #allocation1 [shape = 'u32[72,128]{1,0:T(1,128)}', space=vmem, size = 0x9000, scoped, tag = 'internal scratch']
  %s0 = inlined_call_operand.hbm [shape: f32[2,8,32], index: 0, kind: input, shape index: {}]
  %s1 = inlined_call_operand.hbm [shape: f32[2,8,32], index: 1, kind: input, shape index: {}]
  %s2 = inlined_call_operand.hbm [shape: f32[2,8,32], index: 2, kind: input, shape index: {}]
  %s3 = inlined_call_operand.hbm [shape: f32[32,96], index: 3, kind: input, shape index: {}]
  %s4 = inlined_call_operand.hbm [shape: f32[3,32], index: 4, kind: input, shape index: {}]
  %s5 = inlined_call_operand.hbm [shape: f32[32,32], index: 5, kind: input, shape index: {}]
  %s6 = inlined_call_operand.vmem [shape: f32[1,32], index: 6, kind: input, shape index: {}]
  %s7 = inlined_call_operand.hbm [shape: f32[2,8,32], index: 7, kind: output, shape index: {}]
  %s8 = sld [smem:[#allocation0]]
  $region62: #{multi_head_attention.1} parent=0
    _
  %s10 = ssub.s32 1, %s8
  %s11 = scalar_select 0, %s10, %s8
  $region1: #{multi_head_attention.1} parent=0
    #allocation2 [shape = 'u8[8192]{0}', space=vmem, size = 0x2000, scoped, tag = 'input window, operand 0, single buffered']
    #allocation3 [shape = 's32[1]{0}', space=sflag, size = 0x4, scoped, tag = 'scoped memory for multi_head_attention.1']
    #allocation4 [shape = 's32[1]{0}', space=sflag, size = 0x4, scoped, tag = 'scoped memory for multi_head_attention.1']
    #allocation5 [shape = 'u8[8192]{0}', space=vmem, size = 0x2000, scoped, tag = 'input window, operand 1, single buffered']
    #allocation6 [shape = 's32[1]{0}', space=sflag, size = 0x4, scoped, tag = 'scoped memory for multi_head_attention.1']
    #allocation7 [shape = 'u8[8192]{0}', space=vmem, size = 0x2000, scoped, tag = 'input window, operand 2, single buffered']
    #allocation8 [shape = 'u8[16384]{0}', space=vmem, size = 0x4000, scoped, tag = 'input window, operand 3, single buffered']
    #allocation9 [shape = 's32[1]{0}', space=sflag, size = 0x4, scoped, tag = 'scoped memory for multi_head_attention.1']
    #allocation10 [shape = 'u8[2048]{0}', space=vmem, size = 0x800, scoped, tag = 'input window, operand 4, single buffered']
    #allocation11 [shape = 'u8[16384]{0}', space=vmem, size = 0x4000, scoped, tag = 'input window, operand 5, single buffered']
    #allocation12 [shape = 's32[1]{0}', space=sflag, size = 0x4, scoped, tag = 'scoped memory for multi_head_attention.1']
    #allocation13 [shape = 'u8[8192]{0}', space=vmem, size = 0x2000, scoped, tag = 'output window, operand 0, single buffered']
    %12 = vsyncpa [#allocation3], 0
    %13 = vsyncpa [#allocation6], 0
    %14 = vsyncpa [#allocation9], 0
    %15 = vsyncpa [#allocation12], 0
    %16 = vsyncpa [#allocation4], 0
    // Predicated region
    $region2: #{multi_head_attention.1} parent=1 // pred_check
      _
    $region3: #{multi_head_attention.1} parent=1 // pred_check_branch
      %18 = sbr.rel (0) target = $region5
    $region4: #{multi_head_attention.1} parent=1 // pred_region
      %20 = vsyncadd [#allocation3], 0
      %s21 = sshll.u32 %s0, 4
      %s22 = int_to_ptr.hbm [resolvable:$true] %s21
      %s23 = sshll.u32 [#allocation2], 4
      %s24 = int_to_ptr.vmem [resolvable:$true] %s23
      %29 = dma.hbm_to_vmem [thread:$0]  %s22, 256, %s24, [#allocation3], 128, 128, 8
    $region5: #{multi_head_attention.1} parent=1 // pred_fallthru
      _
    // Predicated region
    $region6: #{multi_head_attention.1} parent=1 // pred_check
      _
    $region7: #{multi_head_attention.1} parent=1 // pred_check_branch
      %31 = sbr.rel (0) target = $region9
    $region8: #{multi_head_attention.1} parent=1 // pred_region
      %33 = vsyncadd [#allocation6], 0
      %s34 = sshll.u32 %s1, 4
      %s35 = int_to_ptr.hbm [resolvable:$true] %s34
      %s36 = sshll.u32 [#allocation5], 4
      %s37 = int_to_ptr.vmem [resolvable:$true] %s36
      %42 = dma.hbm_to_vmem [thread:$0]  %s35, 256, %s37, [#allocation6], 128, 128, 8
    $region9: #{multi_head_attention.1} parent=1 // pred_fallthru
      _
    // Predicated region
    $region10: #{multi_head_attention.1} parent=1 // pred_check
      _
    $region11: #{multi_head_attention.1} parent=1 // pred_check_branch
      %44 = sbr.rel (0) target = $region13
    $region12: #{multi_head_attention.1} parent=1 // pred_region
      %46 = vsyncadd [#allocation6], 0
      %s47 = sshll.u32 %s2, 4
      %s48 = int_to_ptr.hbm [resolvable:$true] %s47
      %s49 = sshll.u32 [#allocation7], 4
      %s50 = int_to_ptr.vmem [resolvable:$true] %s49
      %55 = dma.hbm_to_vmem [thread:$0]  %s48, 256, %s50, [#allocation6], 128, 128, 8
    $region13: #{multi_head_attention.1} parent=1 // pred_fallthru
      _
    // Predicated region
    $region14: #{multi_head_attention.1} parent=1 // pred_check
      _
    $region15: #{multi_head_attention.1} parent=1 // pred_check_branch
      %57 = sbr.rel (0) target = $region17
    $region16: #{multi_head_attention.1} parent=1 // pred_region
      %59 = vsyncadd [#allocation9], 0
      %s60 = sshll.u32 %s3, 4
      %s61 = int_to_ptr.hbm [resolvable:$true] %s60
      %s62 = sshll.u32 [#allocation8], 4
      %s63 = int_to_ptr.vmem [resolvable:$true] %s62
      %68 = dma.hbm_to_vmem [thread:$0]  %s61, 512, %s63, [#allocation9], 128, 128, 8
    $region17: #{multi_head_attention.1} parent=1 // pred_fallthru
      _
    // Predicated region
    $region18: #{multi_head_attention.1} parent=1 // pred_check
      _
    $region19: #{multi_head_attention.1} parent=1 // pred_check_branch
      %70 = sbr.rel (0) target = $region21
    $region20: #{multi_head_attention.1} parent=1 // pred_region
      %72 = vsyncadd [#allocation9], 0
      %s74 = sshll.u32 %s4, 4
      %s75 = int_to_ptr.hbm [resolvable:$true] %s74
      %s76 = sshll.u32 [#allocation10], 4
      %s77 = int_to_ptr.vmem [resolvable:$true] %s76
      %79 = dma.hbm_to_vmem [thread:$0]  %s75, 64, %s77, [#allocation9]
    $region21: #{multi_head_attention.1} parent=1 // pred_fallthru
      _
    // Predicated region
    $region22: #{multi_head_attention.1} parent=1 // pred_check
      _
    $region23: #{multi_head_attention.1} parent=1 // pred_check_branch
      %81 = sbr.rel (0) target = $region25
    $region24: #{multi_head_attention.1} parent=1 // pred_region
      %83 = vsyncadd [#allocation12], 0
      %s84 = sshll.u32 %s5, 4
      %s85 = int_to_ptr.hbm [resolvable:$true] %s84
      %s86 = sshll.u32 [#allocation11], 4
      %s87 = int_to_ptr.vmem [resolvable:$true] %s86
      %92 = dma.hbm_to_vmem [thread:$0]  %s85, 512, %s87, [#allocation12], 128, 128, 8
    $region25: #{multi_head_attention.1} parent=1 // pred_fallthru
      _
    // Predicated region
    $region26: #{multi_head_attention.1} parent=1 // pred_check
      _
    $region27: #{multi_head_attention.1} parent=1 // pred_check_branch
      %94 = sbr.rel (0) target = $region29
    $region28: #{multi_head_attention.1} parent=1 // pred_region
      _
    $region29: #{multi_head_attention.1} parent=1 // pred_fallthru
      _
    // Predicated region
    $region30: #{multi_head_attention.1} parent=1 // pred_check
      _
    $region31: #{multi_head_attention.1} parent=1 // pred_check_branch
      %96 = sbr.rel (0) target = $region33
    $region32: #{multi_head_attention.1} parent=1 // pred_region
      %98 = dma.done [#allocation3], 256
    $region33: #{multi_head_attention.1} parent=1 // pred_fallthru
      _
    // Predicated region
    $region34: #{multi_head_attention.1} parent=1 // pred_check
      _
    $region35: #{multi_head_attention.1} parent=1 // pred_check_branch
      %100 = sbr.rel (0) target = $region37
    $region36: #{multi_head_attention.1} parent=1 // pred_region
      %102 = dma.done [#allocation6], 256
    $region37: #{multi_head_attention.1} parent=1 // pred_fallthru
      _
    // Predicated region
    $region38: #{multi_head_attention.1} parent=1 // pred_check
      _
    $region39: #{multi_head_attention.1} parent=1 // pred_check_branch
      %104 = sbr.rel (0) target = $region41
    $region40: #{multi_head_attention.1} parent=1 // pred_region
      %106 = dma.done [#allocation6], 256
    $region41: #{multi_head_attention.1} parent=1 // pred_fallthru
      _
    // Predicated region
    $region42: #{multi_head_attention.1} parent=1 // pred_check
      _
    $region43: #{multi_head_attention.1} parent=1 // pred_check_branch
      %108 = sbr.rel (0) target = $region45
    $region44: #{multi_head_attention.1} parent=1 // pred_region
      %110 = dma.done [#allocation9], 512
    $region45: #{multi_head_attention.1} parent=1 // pred_fallthru
      _
    // Predicated region
    $region46: #{multi_head_attention.1} parent=1 // pred_check
      _
    $region47: #{multi_head_attention.1} parent=1 // pred_check_branch
      %112 = sbr.rel (0) target = $region49
    $region48: #{multi_head_attention.1} parent=1 // pred_region
      %114 = dma.done [#allocation9], 64
    $region49: #{multi_head_attention.1} parent=1 // pred_fallthru
      _
    // Predicated region
    $region50: #{multi_head_attention.1} parent=1 // pred_check
      _
    $region51: #{multi_head_attention.1} parent=1 // pred_check_branch
      %116 = sbr.rel (0) target = $region53
    $region52: #{multi_head_attention.1} parent=1 // pred_region
      %118 = dma.done [#allocation12], 512
    $region53: #{multi_head_attention.1} parent=1 // pred_fallthru
      _
    %v119 = vld [vmem:[#allocation2] sm:$0xff]
    %v120 = vld [vmem:[#allocation2 + $0x8] sm:$0xff]
    %v121 = vld [vmem:[#allocation5] sm:$0xff]
    %v122 = vld [vmem:[#allocation5 + $0x8] sm:$0xff]
    %v123 = vld [vmem:[#allocation7] sm:$0xff]
    %v124 = vld [vmem:[#allocation7 + $0x8] sm:$0xff]
    %v125 = vld [vmem:[#allocation8] sm:$0xff]
    %v126 = vld [vmem:[#allocation8 + $0x8] sm:$0xff]
    %v127 = vld [vmem:[#allocation8 + $0x10] sm:$0xff]
    %v128 = vld [vmem:[#allocation8 + $0x18] sm:$0xff]
    %vm129 = vcmask 261120
    %v131 = vsel %vm129, %v119, 0
    %v134 = vsel %vm129, %v120, 0
    %v137 = vsel %vm129, %v121, 0
    %v140 = vsel %vm129, %v122, 0
    %v143 = vsel %vm129, %v123, 0
    %v146 = vsel %vm129, %v124, 0
    %148 = vmatpush.msra.mxu0 0.0
    %149 = vmatpush.msra.mxu0 0.0
    %150 = vmatpush.msra.mxu0 0.0
    %151 = vmatpush.msra.mxu0 0.0
    %152 = vmatpush.msra.mxu0 0.0
    %153 = vmatpush.msra.mxu0 0.0
    %154 = vmatpush.msra.mxu0 0.0
    %155 = vmatpush.msra.mxu0 0.0
    %156 = vmatpush.msra.mxu0 0.0
    %157 = vmatpush.msra.mxu0 0.0
    %158 = vmatpush.msra.mxu0 0.0
    %159 = vmatpush.msra.mxu0 0.0
    %160 = vmatpush.msra.mxu0 %v128
    %161 = vmatpush.msra.mxu0 %v127
    %162 = vmatpush.msra.mxu0 %v126
    %163 = vmatpush.msra.mxu0 %v125
    %164 = vmatmul.f32.gmra.mxu0 %v131
    %v165 = vpop.f32.mrf.mxu0
    %v166 = vadd.f32 0.0, %v165
    %167 = vmatmul.f32.gmra.mxu0 %v134
    %v168 = vpop.f32.mrf.mxu0
    %v169 = vadd.f32 0.0, %v168
    %170 = vmatmul.f32.gmra.mxu0 %v137
    %v171 = vpop.f32.mrf.mxu0
    %v172 = vadd.f32 0.0, %v171
    %173 = vmatmul.f32.gmra.mxu0 %v140
    %v174 = vpop.f32.mrf.mxu0
    %v175 = vadd.f32 0.0, %v174
    %176 = vmatmul.f32.gmra.mxu0 %v143
    %v177 = vpop.f32.mrf.mxu0
    %v178 = vadd.f32 0.0, %v177
    %179 = vmatmul.f32.gmra.mxu0 %v146
    %v180 = vpop.f32.mrf.mxu0
    %v181 = vadd.f32 0.0, %v180
    %182 = vdwg.mxu0
    %v183 = vld [vmem:[#allocation10] sm:$0x1]
    %v184 = vperm.slane %v183, 0
    %v185 = vadd.f32 %v166, %v184
    %v186 = vadd.f32 %v169, %v184
    %v187 = vld [vmem:[#allocation10 + $0x1] sm:$0x1]
    %v188 = vperm.slane %v187, 0
    %190 = vrot.lane.b32.xlu0 %v188, 32
    %v191 = vpop.permute.xlu0 %190
    %v193 = vadd.f32 %v172, %v191
    %v194 = vadd.f32 %v175, %v191
    %v195 = vld [vmem:[#allocation10 + $0x2] sm:$0x1]
    %v196 = vperm.slane %v195, 0
    %198 = vrot.lane.b32.xlu0 %v196, 64
    %v199 = vpop.permute.xlu0 %198
    %v201 = vadd.f32 %v178, %v199
    %v202 = vadd.f32 %v181, %v199
    %204 = vrot.lane.b32.xlu0 %v193, 96
    %v205 = vpop.permute.xlu0 %204
    %vm206 = vcmask 64512
    %v208 = vsel %vm206, %v185, 0
    %v210 = vsel %vm206, %v205, 0
    %212 = vmatpush.xpose.msra.mxu0 0.0
    %213 = vmatpush.xpose.msra.mxu0 0.0
    %214 = vmatpush.xpose.msra.mxu0 0.0
    %215 = vmatpush.xpose.msra.mxu0 0.0
    %216 = vmatpush.xpose.msra.mxu0 0.0
    %217 = vmatpush.xpose.msra.mxu0 0.0
    %218 = vmatpush.xpose.msra.mxu0 0.0
    %219 = vmatpush.xpose.msra.mxu0 0.0
    %220 = vmatpush.xpose.msra.mxu0 0.0
    %221 = vmatpush.xpose.msra.mxu0 0.0
    %222 = vmatpush.xpose.msra.mxu0 0.0
    %223 = vmatpush.xpose.msra.mxu0 0.0
    %224 = vmatpush.xpose.msra.mxu0 0.0
    %225 = vmatpush.xpose.msra.mxu0 0.0
    %226 = vmatpush.xpose.msra.mxu0 0.0
    %227 = vmatpush.xpose.msra.mxu0 %v210
    %228 = vmatmul.f32.gmra.mxu0 %v208
    %v229 = vpop.f32.mrf.mxu0
    %v230 = vadd.f32 0.0, %v229
    %231 = vdwg.mxu0
    %233 = vrot.lane.b32.xlu0 %v194, 96
    %v234 = vpop.permute.xlu0 %233
    %v236 = vsel %vm206, %v186, 0
    %v238 = vsel %vm206, %v234, 0
    %240 = vmatpush.xpose.msra.mxu0 0.0
    %241 = vmatpush.xpose.msra.mxu0 0.0
    %242 = vmatpush.xpose.msra.mxu0 0.0
    %243 = vmatpush.xpose.msra.mxu0 0.0
    %244 = vmatpush.xpose.msra.mxu0 0.0
    %245 = vmatpush.xpose.msra.mxu0 0.0
    %246 = vmatpush.xpose.msra.mxu0 0.0
    %247 = vmatpush.xpose.msra.mxu0 0.0
    %248 = vmatpush.xpose.msra.mxu0 0.0
    %249 = vmatpush.xpose.msra.mxu0 0.0
    %250 = vmatpush.xpose.msra.mxu0 0.0
    %251 = vmatpush.xpose.msra.mxu0 0.0
    %252 = vmatpush.xpose.msra.mxu0 0.0
    %253 = vmatpush.xpose.msra.mxu0 0.0
    %254 = vmatpush.xpose.msra.mxu0 0.0
    %255 = vmatpush.xpose.msra.mxu0 %v238
    %256 = vmatmul.f32.gmra.mxu0 %v236
    %v257 = vpop.f32.mrf.mxu0
    %v258 = vadd.f32 0.0, %v257
    %259 = vdwg.mxu0
    %v260 = vmul.f32 %v230, 0.35355338
    %v261 = vmul.f32 %v258, 0.35355338
    %v262 = vsel %vm206, %v260, -inf
    %263 = vmax.xlane.f32.xlu0 %v262
    %v264 = vpop.xlane.xlu0 %263
    %v265 = vsel %vm206, %v261, -inf
    %266 = vmax.xlane.f32.xlu0 %v265
    %v267 = vpop.xlane.xlu0 %266
    %v268 = vsub.f32 %v260, %v264
    %v269 = vsub.f32 %v261, %v267
    %v270 = vmul.f32 %v268, 1.442695
    %v271 = vpow.pop %v270
    %v272 = vmul.f32 %v269, 1.442695
    %v273 = vpow.pop %v272
    %v274 = vsel %vm206, %v271, 0.0
    %275 = vadd.xlane.f32.xlu0 %v274
    %v276 = vpop.xlane.xlu0 %275
    %v277 = vsel %vm206, %v273, 0.0
    %278 = vadd.xlane.f32.xlu0 %v277
    %v279 = vpop.xlane.xlu0 %278
    %v280 = vrcp.pop %v276
    %v281 = vmul.f32 %v276, %v280
    %v282 = vsub.f32 1.0, %v281
    %v283 = vmul.f32 %v280, %v282
    %v284 = vadd.f32 %v280, %v283
    %vm285 = vweird.f32 %v276
    %vm286 = vweird.f32 %v280
    %vm287 = vmor %vm285, %vm286
    %v288 = vsel %vm287, %v280, %v284
    %v289 = vand.u32 2147483647, %v276
    %vm290 = vcmp.eq.f32.partialorder %v289, 8.507059e+37
    %v291 = vand.u32 %v276, 2147483648
    %v292 = vor.u32 1.1754944e-38, %v291
    %v293 = vsel %vm290, %v292, %v288
    %v294 = vmul.f32 %v271, %v293
    %v295 = vrcp.pop %v279
    %v296 = vmul.f32 %v279, %v295
    %v297 = vsub.f32 1.0, %v296
    %v298 = vmul.f32 %v295, %v297
    %v299 = vadd.f32 %v295, %v298
    %vm300 = vweird.f32 %v279
    %vm301 = vweird.f32 %v295
    %vm302 = vmor %vm300, %vm301
    %v303 = vsel %vm302, %v295, %v299
    %v304 = vand.u32 2147483647, %v279
    %vm305 = vcmp.eq.f32.partialorder %v304, 8.507059e+37
    %v306 = vand.u32 %v279, 2147483648
    %v307 = vor.u32 1.1754944e-38, %v306
    %v308 = vsel %vm305, %v307, %v303
    %v309 = vmul.f32 %v273, %v308
    %311 = vrot.lane.b32.xlu0 %v201, 64
    %v312 = vpop.permute.xlu0 %311
    %v315 = vsel %vm206, %v294, 0
    %317 = vmatpush.msra.mxu0 0.0
    %318 = vmatpush.msra.mxu0 0.0
    %319 = vmatpush.msra.mxu0 0.0
    %320 = vmatpush.msra.mxu0 0.0
    %321 = vmatpush.msra.mxu0 0.0
    %322 = vmatpush.msra.mxu0 0.0
    %323 = vmatpush.msra.mxu0 0.0
    %324 = vmatpush.msra.mxu0 0.0
    %325 = vmatpush.msra.mxu0 0.0
    %326 = vmatpush.msra.mxu0 0.0
    %327 = vmatpush.msra.mxu0 0.0
    %328 = vmatpush.msra.mxu0 0.0
    %329 = vmatpush.msra.mxu0 0.0
    %330 = vmatpush.msra.mxu0 0.0
    %331 = vmatpush.msra.mxu0 0.0
    %332 = vmatpush.msra.mxu0 %v312
    %333 = vmatmul.f32.gmra.mxu0 %v315
    %v334 = vpop.f32.mrf.mxu0
    %v335 = vadd.f32 0.0, %v334
    %336 = vdwg.mxu0
    %338 = vrot.lane.b32.xlu0 %v202, 64
    %v339 = vpop.permute.xlu0 %338
    %v342 = vsel %vm206, %v309, 0
    %344 = vmatpush.msra.mxu0 0.0
    %345 = vmatpush.msra.mxu0 0.0
    %346 = vmatpush.msra.mxu0 0.0
    %347 = vmatpush.msra.mxu0 0.0
    %348 = vmatpush.msra.mxu0 0.0
    %349 = vmatpush.msra.mxu0 0.0
    %350 = vmatpush.msra.mxu0 0.0
    %351 = vmatpush.msra.mxu0 0.0
    %352 = vmatpush.msra.mxu0 0.0
    %353 = vmatpush.msra.mxu0 0.0
    %354 = vmatpush.msra.mxu0 0.0
    %355 = vmatpush.msra.mxu0 0.0
    %356 = vmatpush.msra.mxu0 0.0
    %357 = vmatpush.msra.mxu0 0.0
    %358 = vmatpush.msra.mxu0 0.0
    %359 = vmatpush.msra.mxu0 %v339
    %360 = vmatmul.f32.gmra.mxu0 %v342
    %v361 = vpop.f32.mrf.mxu0
    %v362 = vadd.f32 0.0, %v361
    %363 = vdwg.mxu0
    %364 = vrot.lane.b32.xlu0 %v185, 120
    %v365 = vpop.permute.xlu0 %364
    %366 = vrot.lane.b32.xlu0 %v193, 88
    %v367 = vpop.permute.xlu0 %366
    %v368 = vsel %vm206, %v365, 0
    %v370 = vsel %vm206, %v367, 0
    %372 = vmatpush.xpose.msra.mxu0 0.0
    %373 = vmatpush.xpose.msra.mxu0 0.0
    %374 = vmatpush.xpose.msra.mxu0 0.0
    %375 = vmatpush.xpose.msra.mxu0 0.0
    %376 = vmatpush.xpose.msra.mxu0 0.0
    %377 = vmatpush.xpose.msra.mxu0 0.0
    %378 = vmatpush.xpose.msra.mxu0 0.0
    %379 = vmatpush.xpose.msra.mxu0 0.0
    %380 = vmatpush.xpose.msra.mxu0 0.0
    %381 = vmatpush.xpose.msra.mxu0 0.0
    %382 = vmatpush.xpose.msra.mxu0 0.0
    %383 = vmatpush.xpose.msra.mxu0 0.0
    %384 = vmatpush.xpose.msra.mxu0 0.0
    %385 = vmatpush.xpose.msra.mxu0 0.0
    %386 = vmatpush.xpose.msra.mxu0 0.0
    %387 = vmatpush.xpose.msra.mxu0 %v370
    %388 = vmatmul.f32.gmra.mxu0 %v368
    %v389 = vpop.f32.mrf.mxu0
    %v390 = vadd.f32 0.0, %v389
    %391 = vdwg.mxu0
    %392 = vrot.lane.b32.xlu0 %v186, 120
    %v393 = vpop.permute.xlu0 %392
    %394 = vrot.lane.b32.xlu0 %v194, 88
    %v395 = vpop.permute.xlu0 %394
    %v396 = vsel %vm206, %v393, 0
    %v398 = vsel %vm206, %v395, 0
    %400 = vmatpush.xpose.msra.mxu0 0.0
    %401 = vmatpush.xpose.msra.mxu0 0.0
    %402 = vmatpush.xpose.msra.mxu0 0.0
    %403 = vmatpush.xpose.msra.mxu0 0.0
    %404 = vmatpush.xpose.msra.mxu0 0.0
    %405 = vmatpush.xpose.msra.mxu0 0.0
    %406 = vmatpush.xpose.msra.mxu0 0.0
    %407 = vmatpush.xpose.msra.mxu0 0.0
    %408 = vmatpush.xpose.msra.mxu0 0.0
    %409 = vmatpush.xpose.msra.mxu0 0.0
    %410 = vmatpush.xpose.msra.mxu0 0.0
    %411 = vmatpush.xpose.msra.mxu0 0.0
    %412 = vmatpush.xpose.msra.mxu0 0.0
    %413 = vmatpush.xpose.msra.mxu0 0.0
    %414 = vmatpush.xpose.msra.mxu0 0.0
    %415 = vmatpush.xpose.msra.mxu0 %v398
    %416 = vmatmul.f32.gmra.mxu0 %v396
    %v417 = vpop.f32.mrf.mxu0
    %v418 = vadd.f32 0.0, %v417
    %419 = vdwg.mxu0
    %v420 = vmul.f32 %v390, 0.35355338
    %v421 = vmul.f32 %v418, 0.35355338
    %v422 = vsel %vm206, %v420, -inf
    %423 = vmax.xlane.f32.xlu0 %v422
    %v424 = vpop.xlane.xlu0 %423
    %v425 = vsel %vm206, %v421, -inf
    %426 = vmax.xlane.f32.xlu0 %v425
    %v427 = vpop.xlane.xlu0 %426
    %v428 = vsub.f32 %v420, %v424
    %v429 = vsub.f32 %v421, %v427
    %v430 = vmul.f32 %v428, 1.442695
    %v431 = vpow.pop %v430
    %v432 = vmul.f32 %v429, 1.442695
    %v433 = vpow.pop %v432
    %v434 = vsel %vm206, %v431, 0.0
    %435 = vadd.xlane.f32.xlu0 %v434
    %v436 = vpop.xlane.xlu0 %435
    %v437 = vsel %vm206, %v433, 0.0
    %438 = vadd.xlane.f32.xlu0 %v437
    %v439 = vpop.xlane.xlu0 %438
    %v440 = vrcp.pop %v436
    %v441 = vmul.f32 %v436, %v440
    %v442 = vsub.f32 1.0, %v441
    %v443 = vmul.f32 %v440, %v442
    %v444 = vadd.f32 %v440, %v443
    %vm445 = vweird.f32 %v436
    %vm446 = vweird.f32 %v440
    %vm447 = vmor %vm445, %vm446
    %v448 = vsel %vm447, %v440, %v444
    %v449 = vand.u32 2147483647, %v436
    %vm450 = vcmp.eq.f32.partialorder %v449, 8.507059e+37
    %v451 = vand.u32 %v436, 2147483648
    %v452 = vor.u32 1.1754944e-38, %v451
    %v453 = vsel %vm450, %v452, %v448
    %v454 = vmul.f32 %v431, %v453
    %v455 = vrcp.pop %v439
    %v456 = vmul.f32 %v439, %v455
    %v457 = vsub.f32 1.0, %v456
    %v458 = vmul.f32 %v455, %v457
    %v459 = vadd.f32 %v455, %v458
    %vm460 = vweird.f32 %v439
    %vm461 = vweird.f32 %v455
    %vm462 = vmor %vm460, %vm461
    %v463 = vsel %vm462, %v455, %v459
    %v464 = vand.u32 2147483647, %v439
    %vm465 = vcmp.eq.f32.partialorder %v464, 8.507059e+37
    %v466 = vand.u32 %v439, 2147483648
    %v467 = vor.u32 1.1754944e-38, %v466
    %v468 = vsel %vm465, %v467, %v463
    %v469 = vmul.f32 %v433, %v468
    %470 = vrot.lane.b32.xlu0 %v201, 56
    %v471 = vpop.permute.xlu0 %470
    %v474 = vsel %vm206, %v454, 0
    %476 = vmatpush.msra.mxu0 0.0
    %477 = vmatpush.msra.mxu0 0.0
    %478 = vmatpush.msra.mxu0 0.0
    %479 = vmatpush.msra.mxu0 0.0
    %480 = vmatpush.msra.mxu0 0.0
    %481 = vmatpush.msra.mxu0 0.0
    %482 = vmatpush.msra.mxu0 0.0
    %483 = vmatpush.msra.mxu0 0.0
    %484 = vmatpush.msra.mxu0 0.0
    %485 = vmatpush.msra.mxu0 0.0
    %486 = vmatpush.msra.mxu0 0.0
    %487 = vmatpush.msra.mxu0 0.0
    %488 = vmatpush.msra.mxu0 0.0
    %489 = vmatpush.msra.mxu0 0.0
    %490 = vmatpush.msra.mxu0 0.0
    %491 = vmatpush.msra.mxu0 %v471
    %492 = vmatmul.f32.gmra.mxu0 %v474
    %v493 = vpop.f32.mrf.mxu0
    %v494 = vadd.f32 0.0, %v493
    %495 = vdwg.mxu0
    %496 = vrot.lane.b32.xlu0 %v202, 56
    %v497 = vpop.permute.xlu0 %496
    %v500 = vsel %vm206, %v469, 0
    %502 = vmatpush.msra.mxu0 0.0
    %503 = vmatpush.msra.mxu0 0.0
    %504 = vmatpush.msra.mxu0 0.0
    %505 = vmatpush.msra.mxu0 0.0
    %506 = vmatpush.msra.mxu0 0.0
    %507 = vmatpush.msra.mxu0 0.0
    %508 = vmatpush.msra.mxu0 0.0
    %509 = vmatpush.msra.mxu0 0.0
    %510 = vmatpush.msra.mxu0 0.0
    %511 = vmatpush.msra.mxu0 0.0
    %512 = vmatpush.msra.mxu0 0.0
    %513 = vmatpush.msra.mxu0 0.0
    %514 = vmatpush.msra.mxu0 0.0
    %515 = vmatpush.msra.mxu0 0.0
    %516 = vmatpush.msra.mxu0 0.0
    %517 = vmatpush.msra.mxu0 %v497
    %518 = vmatmul.f32.gmra.mxu0 %v500
    %v519 = vpop.f32.mrf.mxu0
    %v520 = vadd.f32 0.0, %v519
    %521 = vdwg.mxu0
    %522 = vrot.lane.b32.xlu0 %v185, 112
    %v523 = vpop.permute.xlu0 %522
    %524 = vrot.lane.b32.xlu0 %v193, 80
    %v525 = vpop.permute.xlu0 %524
    %v526 = vsel %vm206, %v523, 0
    %v528 = vsel %vm206, %v525, 0
    %530 = vmatpush.xpose.msra.mxu0 0.0
    %531 = vmatpush.xpose.msra.mxu0 0.0
    %532 = vmatpush.xpose.msra.mxu0 0.0
    %533 = vmatpush.xpose.msra.mxu0 0.0
    %534 = vmatpush.xpose.msra.mxu0 0.0
    %535 = vmatpush.xpose.msra.mxu0 0.0
    %536 = vmatpush.xpose.msra.mxu0 0.0
    %537 = vmatpush.xpose.msra.mxu0 0.0
    %538 = vmatpush.xpose.msra.mxu0 0.0
    %539 = vmatpush.xpose.msra.mxu0 0.0
    %540 = vmatpush.xpose.msra.mxu0 0.0
    %541 = vmatpush.xpose.msra.mxu0 0.0
    %542 = vmatpush.xpose.msra.mxu0 0.0
    %543 = vmatpush.xpose.msra.mxu0 0.0
    %544 = vmatpush.xpose.msra.mxu0 0.0
    %545 = vmatpush.xpose.msra.mxu0 %v528
    %546 = vmatmul.f32.gmra.mxu0 %v526
    %v547 = vpop.f32.mrf.mxu0
    %v548 = vadd.f32 0.0, %v547
    %549 = vdwg.mxu0
    %550 = vrot.lane.b32.xlu0 %v186, 112
    %v551 = vpop.permute.xlu0 %550
    %552 = vrot.lane.b32.xlu0 %v194, 80
    %v553 = vpop.permute.xlu0 %552
    %v554 = vsel %vm206, %v551, 0
    %v556 = vsel %vm206, %v553, 0
    %558 = vmatpush.xpose.msra.mxu0 0.0
    %559 = vmatpush.xpose.msra.mxu0 0.0
    %560 = vmatpush.xpose.msra.mxu0 0.0
    %561 = vmatpush.xpose.msra.mxu0 0.0
    %562 = vmatpush.xpose.msra.mxu0 0.0
    %563 = vmatpush.xpose.msra.mxu0 0.0
    %564 = vmatpush.xpose.msra.mxu0 0.0
    %565 = vmatpush.xpose.msra.mxu0 0.0
    %566 = vmatpush.xpose.msra.mxu0 0.0
    %567 = vmatpush.xpose.msra.mxu0 0.0
    %568 = vmatpush.xpose.msra.mxu0 0.0
    %569 = vmatpush.xpose.msra.mxu0 0.0
    %570 = vmatpush.xpose.msra.mxu0 0.0
    %571 = vmatpush.xpose.msra.mxu0 0.0
    %572 = vmatpush.xpose.msra.mxu0 0.0
    %573 = vmatpush.xpose.msra.mxu0 %v556
    %574 = vmatmul.f32.gmra.mxu0 %v554
    %v575 = vpop.f32.mrf.mxu0
    %v576 = vadd.f32 0.0, %v575
    %577 = vdwg.mxu0
    %v578 = vmul.f32 %v548, 0.35355338
    %v579 = vmul.f32 %v576, 0.35355338
    %v580 = vsel %vm206, %v578, -inf
    %581 = vmax.xlane.f32.xlu0 %v580
    %v582 = vpop.xlane.xlu0 %581
    %v583 = vsel %vm206, %v579, -inf
    %584 = vmax.xlane.f32.xlu0 %v583
    %v585 = vpop.xlane.xlu0 %584
    %v586 = vsub.f32 %v578, %v582
    %v587 = vsub.f32 %v579, %v585
    %v588 = vmul.f32 %v586, 1.442695
    %v589 = vpow.pop %v588
    %v590 = vmul.f32 %v587, 1.442695
    %v591 = vpow.pop %v590
    %v592 = vsel %vm206, %v589, 0.0
    %593 = vadd.xlane.f32.xlu0 %v592
    %v594 = vpop.xlane.xlu0 %593
    %v595 = vsel %vm206, %v591, 0.0
    %596 = vadd.xlane.f32.xlu0 %v595
    %v597 = vpop.xlane.xlu0 %596
    %v598 = vrcp.pop %v594
    %v599 = vmul.f32 %v594, %v598
    %v600 = vsub.f32 1.0, %v599
    %v601 = vmul.f32 %v598, %v600
    %v602 = vadd.f32 %v598, %v601
    %vm603 = vweird.f32 %v594
    %vm604 = vweird.f32 %v598
    %vm605 = vmor %vm603, %vm604
    %v606 = vsel %vm605, %v598, %v602
    %v607 = vand.u32 2147483647, %v594
    %vm608 = vcmp.eq.f32.partialorder %v607, 8.507059e+37
    %v609 = vand.u32 %v594, 2147483648
    %v610 = vor.u32 1.1754944e-38, %v609
    %v611 = vsel %vm608, %v610, %v606
    %v612 = vmul.f32 %v589, %v611
    %v613 = vrcp.pop %v597
    %v614 = vmul.f32 %v597, %v613
    %v615 = vsub.f32 1.0, %v614
    %v616 = vmul.f32 %v613, %v615
    %v617 = vadd.f32 %v613, %v616
    %vm618 = vweird.f32 %v597
    %vm619 = vweird.f32 %v613
    %vm620 = vmor %vm618, %vm619
    %v621 = vsel %vm620, %v613, %v617
    %v622 = vand.u32 2147483647, %v597
    %vm623 = vcmp.eq.f32.partialorder %v622, 8.507059e+37
    %v624 = vand.u32 %v597, 2147483648
    %v625 = vor.u32 1.1754944e-38, %v624
    %v626 = vsel %vm623, %v625, %v621
    %v627 = vmul.f32 %v591, %v626
    %628 = vrot.lane.b32.xlu0 %v201, 48
    %v629 = vpop.permute.xlu0 %628
    %v632 = vsel %vm206, %v612, 0
    %634 = vmatpush.msra.mxu0 0.0
    %635 = vmatpush.msra.mxu0 0.0
    %636 = vmatpush.msra.mxu0 0.0
    %637 = vmatpush.msra.mxu0 0.0
    %638 = vmatpush.msra.mxu0 0.0
    %639 = vmatpush.msra.mxu0 0.0
    %640 = vmatpush.msra.mxu0 0.0
    %641 = vmatpush.msra.mxu0 0.0
    %642 = vmatpush.msra.mxu0 0.0
    %643 = vmatpush.msra.mxu0 0.0
    %644 = vmatpush.msra.mxu0 0.0
    %645 = vmatpush.msra.mxu0 0.0
    %646 = vmatpush.msra.mxu0 0.0
    %647 = vmatpush.msra.mxu0 0.0
    %648 = vmatpush.msra.mxu0 0.0
    %649 = vmatpush.msra.mxu0 %v629
    %650 = vmatmul.f32.gmra.mxu0 %v632
    %v651 = vpop.f32.mrf.mxu0
    %v652 = vadd.f32 0.0, %v651
    %653 = vdwg.mxu0
    %654 = vrot.lane.b32.xlu0 %v202, 48
    %v655 = vpop.permute.xlu0 %654
    %v658 = vsel %vm206, %v627, 0
    %660 = vmatpush.msra.mxu0 0.0
    %661 = vmatpush.msra.mxu0 0.0
    %662 = vmatpush.msra.mxu0 0.0
    %663 = vmatpush.msra.mxu0 0.0
    %664 = vmatpush.msra.mxu0 0.0
    %665 = vmatpush.msra.mxu0 0.0
    %666 = vmatpush.msra.mxu0 0.0
    %667 = vmatpush.msra.mxu0 0.0
    %668 = vmatpush.msra.mxu0 0.0
    %669 = vmatpush.msra.mxu0 0.0
    %670 = vmatpush.msra.mxu0 0.0
    %671 = vmatpush.msra.mxu0 0.0
    %672 = vmatpush.msra.mxu0 0.0
    %673 = vmatpush.msra.mxu0 0.0
    %674 = vmatpush.msra.mxu0 0.0
    %675 = vmatpush.msra.mxu0 %v655
    %676 = vmatmul.f32.gmra.mxu0 %v658
    %v677 = vpop.f32.mrf.mxu0
    %v678 = vadd.f32 0.0, %v677
    %679 = vdwg.mxu0
    %680 = vrot.lane.b32.xlu0 %v185, 104
    %v681 = vpop.permute.xlu0 %680
    %682 = vrot.lane.b32.xlu0 %v193, 72
    %v683 = vpop.permute.xlu0 %682
    %v684 = vsel %vm206, %v681, 0
    %v686 = vsel %vm206, %v683, 0
    %688 = vmatpush.xpose.msra.mxu0 0.0
    %689 = vmatpush.xpose.msra.mxu0 0.0
    %690 = vmatpush.xpose.msra.mxu0 0.0
    %691 = vmatpush.xpose.msra.mxu0 0.0
    %692 = vmatpush.xpose.msra.mxu0 0.0
    %693 = vmatpush.xpose.msra.mxu0 0.0
    %694 = vmatpush.xpose.msra.mxu0 0.0
    %695 = vmatpush.xpose.msra.mxu0 0.0
    %696 = vmatpush.xpose.msra.mxu0 0.0
    %697 = vmatpush.xpose.msra.mxu0 0.0
    %698 = vmatpush.xpose.msra.mxu0 0.0
    %699 = vmatpush.xpose.msra.mxu0 0.0
    %700 = vmatpush.xpose.msra.mxu0 0.0
    %701 = vmatpush.xpose.msra.mxu0 0.0
    %702 = vmatpush.xpose.msra.mxu0 0.0
    %703 = vmatpush.xpose.msra.mxu0 %v686
    %704 = vmatmul.f32.gmra.mxu0 %v684
    %v705 = vpop.f32.mrf.mxu0
    %v706 = vadd.f32 0.0, %v705
    %707 = vdwg.mxu0
    %708 = vrot.lane.b32.xlu0 %v186, 104
    %v709 = vpop.permute.xlu0 %708
    %710 = vrot.lane.b32.xlu0 %v194, 72
    %v711 = vpop.permute.xlu0 %710
    %v712 = vsel %vm206, %v709, 0
    %v714 = vsel %vm206, %v711, 0
    %716 = vmatpush.xpose.msra.mxu0 0.0
    %717 = vmatpush.xpose.msra.mxu0 0.0
    %718 = vmatpush.xpose.msra.mxu0 0.0
    %719 = vmatpush.xpose.msra.mxu0 0.0
    %720 = vmatpush.xpose.msra.mxu0 0.0
    %721 = vmatpush.xpose.msra.mxu0 0.0
    %722 = vmatpush.xpose.msra.mxu0 0.0
    %723 = vmatpush.xpose.msra.mxu0 0.0
    %724 = vmatpush.xpose.msra.mxu0 0.0
    %725 = vmatpush.xpose.msra.mxu0 0.0
    %726 = vmatpush.xpose.msra.mxu0 0.0
    %727 = vmatpush.xpose.msra.mxu0 0.0
    %728 = vmatpush.xpose.msra.mxu0 0.0
    %729 = vmatpush.xpose.msra.mxu0 0.0
    %730 = vmatpush.xpose.msra.mxu0 0.0
    %731 = vmatpush.xpose.msra.mxu0 %v714
    %732 = vmatmul.f32.gmra.mxu0 %v712
    %v733 = vpop.f32.mrf.mxu0
    %v734 = vadd.f32 0.0, %v733
    %735 = vdwg.mxu0
    %v736 = vmul.f32 %v706, 0.35355338
    %v737 = vmul.f32 %v734, 0.35355338
    %v738 = vsel %vm206, %v736, -inf
    %739 = vmax.xlane.f32.xlu0 %v738
    %v740 = vpop.xlane.xlu0 %739
    %v741 = vsel %vm206, %v737, -inf
    %742 = vmax.xlane.f32.xlu0 %v741
    %v743 = vpop.xlane.xlu0 %742
    %v744 = vsub.f32 %v736, %v740
    %v745 = vsub.f32 %v737, %v743
    %v746 = vmul.f32 %v744, 1.442695
    %v747 = vpow.pop %v746
    %v748 = vmul.f32 %v745, 1.442695
    %v749 = vpow.pop %v748
    %v750 = vsel %vm206, %v747, 0.0
    %751 = vadd.xlane.f32.xlu0 %v750
    %v752 = vpop.xlane.xlu0 %751
    %v753 = vsel %vm206, %v749, 0.0
    %754 = vadd.xlane.f32.xlu0 %v753
    %v755 = vpop.xlane.xlu0 %754
    %v756 = vrcp.pop %v752
    %v757 = vmul.f32 %v752, %v756
    %v758 = vsub.f32 1.0, %v757
    %v759 = vmul.f32 %v756, %v758
    %v760 = vadd.f32 %v756, %v759
    %vm761 = vweird.f32 %v752
    %vm762 = vweird.f32 %v756
    %vm763 = vmor %vm761, %vm762
    %v764 = vsel %vm763, %v756, %v760
    %v765 = vand.u32 2147483647, %v752
    %vm766 = vcmp.eq.f32.partialorder %v765, 8.507059e+37
    %v767 = vand.u32 %v752, 2147483648
    %v768 = vor.u32 1.1754944e-38, %v767
    %v769 = vsel %vm766, %v768, %v764
    %v770 = vmul.f32 %v747, %v769
    %v771 = vrcp.pop %v755
    %v772 = vmul.f32 %v755, %v771
    %v773 = vsub.f32 1.0, %v772
    %v774 = vmul.f32 %v771, %v773
    %v775 = vadd.f32 %v771, %v774
    %vm776 = vweird.f32 %v755
    %vm777 = vweird.f32 %v771
    %vm778 = vmor %vm776, %vm777
    %v779 = vsel %vm778, %v771, %v775
    %v780 = vand.u32 2147483647, %v755
    %vm781 = vcmp.eq.f32.partialorder %v780, 8.507059e+37
    %v782 = vand.u32 %v755, 2147483648
    %v783 = vor.u32 1.1754944e-38, %v782
    %v784 = vsel %vm781, %v783, %v779
    %v785 = vmul.f32 %v749, %v784
    %786 = vrot.lane.b32.xlu0 %v201, 40
    %v787 = vpop.permute.xlu0 %786
    %v790 = vsel %vm206, %v770, 0
    %792 = vmatpush.msra.mxu0 0.0
    %793 = vmatpush.msra.mxu0 0.0
    %794 = vmatpush.msra.mxu0 0.0
    %795 = vmatpush.msra.mxu0 0.0
    %796 = vmatpush.msra.mxu0 0.0
    %797 = vmatpush.msra.mxu0 0.0
    %798 = vmatpush.msra.mxu0 0.0
    %799 = vmatpush.msra.mxu0 0.0
    %800 = vmatpush.msra.mxu0 0.0
    %801 = vmatpush.msra.mxu0 0.0
    %802 = vmatpush.msra.mxu0 0.0
    %803 = vmatpush.msra.mxu0 0.0
    %804 = vmatpush.msra.mxu0 0.0
    %805 = vmatpush.msra.mxu0 0.0
    %806 = vmatpush.msra.mxu0 0.0
    %807 = vmatpush.msra.mxu0 %v787
    %808 = vmatmul.f32.gmra.mxu0 %v790
    %v809 = vpop.f32.mrf.mxu0
    %v810 = vadd.f32 0.0, %v809
    %811 = vdwg.mxu0
    %812 = vrot.lane.b32.xlu0 %v202, 40
    %v813 = vpop.permute.xlu0 %812
    %v816 = vsel %vm206, %v785, 0
    %818 = vmatpush.msra.mxu0 0.0
    %819 = vmatpush.msra.mxu0 0.0
    %820 = vmatpush.msra.mxu0 0.0
    %821 = vmatpush.msra.mxu0 0.0
    %822 = vmatpush.msra.mxu0 0.0
    %823 = vmatpush.msra.mxu0 0.0
    %824 = vmatpush.msra.mxu0 0.0
    %825 = vmatpush.msra.mxu0 0.0
    %826 = vmatpush.msra.mxu0 0.0
    %827 = vmatpush.msra.mxu0 0.0
    %828 = vmatpush.msra.mxu0 0.0
    %829 = vmatpush.msra.mxu0 0.0
    %830 = vmatpush.msra.mxu0 0.0
    %831 = vmatpush.msra.mxu0 0.0
    %832 = vmatpush.msra.mxu0 0.0
    %833 = vmatpush.msra.mxu0 %v813
    %834 = vmatmul.f32.gmra.mxu0 %v816
    %v835 = vpop.f32.mrf.mxu0
    %v836 = vadd.f32 0.0, %v835
    %837 = vdwg.mxu0
    %840 = vrot.lane.b32.xlu0 %v494, 8
    %v841 = vpop.permute.xlu0 %840
    %842 = vrot.lane.b32.xlu0 %v520, 8
    %v843 = vpop.permute.xlu0 %842
    %848 = vrot.lane.b32.xlu0 %v652, 16
    %v849 = vpop.permute.xlu0 %848
    %850 = vrot.lane.b32.xlu0 %v678, 16
    %v851 = vpop.permute.xlu0 %850
    %856 = vrot.lane.b32.xlu0 %v810, 24
    %v857 = vpop.permute.xlu0 %856
    %858 = vrot.lane.b32.xlu0 %v836, 24
    %v859 = vpop.permute.xlu0 %858
    %v862 = vsel %vm206, %v335, %v841
    %v863 = vsel %vm206, %v362, %v843
    %vm864 = vcmask 130048
    %v865 = vsel %vm864, %v862, %v849
    %v866 = vsel %vm864, %v863, %v851
    %vm867 = vcmask 195584
    %v868 = vsel %vm867, %v865, %v857
    %v869 = vsel %vm867, %v866, %v859
    %v870 = vld [vmem:[#allocation11] sm:$0xff]
    %v871 = vld [vmem:[#allocation11 + $0x8] sm:$0xff]
    %v872 = vld [vmem:[#allocation11 + $0x10] sm:$0xff]
    %v873 = vld [vmem:[#allocation11 + $0x18] sm:$0xff]
    %v874 = vld [vmem:[%s6] sm:$0x1]
    %v876 = vperm.slane %v874, 0
    %v879 = vsel %vm129, %v868, 0
    %v882 = vsel %vm129, %v869, 0
    %884 = vmatpush.msra.mxu0 0.0
    %885 = vmatpush.msra.mxu0 0.0
    %886 = vmatpush.msra.mxu0 0.0
    %887 = vmatpush.msra.mxu0 0.0
    %888 = vmatpush.msra.mxu0 0.0
    %889 = vmatpush.msra.mxu0 0.0
    %890 = vmatpush.msra.mxu0 0.0
    %891 = vmatpush.msra.mxu0 0.0
    %892 = vmatpush.msra.mxu0 0.0
    %893 = vmatpush.msra.mxu0 0.0
    %894 = vmatpush.msra.mxu0 0.0
    %895 = vmatpush.msra.mxu0 0.0
    %896 = vmatpush.msra.mxu0 %v873
    %897 = vmatpush.msra.mxu0 %v872
    %898 = vmatpush.msra.mxu0 %v871
    %899 = vmatpush.msra.mxu0 %v870
    %900 = vmatmul.f32.gmra.mxu0 %v879
    %v901 = vpop.f32.mrf.mxu0
    %v902 = vadd.f32 %v876, %v901
    %903 = vmatmul.f32.gmra.mxu0 %v882
    %v904 = vpop.f32.mrf.mxu0
    %v905 = vadd.f32 %v876, %v904
    %906 = vdwg.mxu0
    %907 = vst.msk [vmem:[#allocation13] sm:$0xff] %vm129, %v902
    %908 = vst.msk [vmem:[#allocation13 + $0x8] sm:$0xff] %vm129, %v905
    // Predicated region
    $region54: #{multi_head_attention.1} parent=1 // pred_check
      _
    $region55: #{multi_head_attention.1} parent=1 // pred_check_branch
      %910 = sbr.rel (0) target = $region57
    $region56: #{multi_head_attention.1} parent=1 // pred_region
      %912 = vsyncadd [#allocation4], 0
      %s913 = sshll.u32 [#allocation13], 4
      %s914 = int_to_ptr.vmem [resolvable:$true] %s913
      %s915 = sshll.u32 %s7, 4
      %s916 = int_to_ptr.hbm [resolvable:$true] %s915
      %921 = dma.vmem_to_hbm [thread:$0]  %s914, 256, %s916, [#allocation4], 128, 128, 8
    $region57: #{multi_head_attention.1} parent=1 // pred_fallthru
      _
    // Predicated region
    $region58: #{multi_head_attention.1} parent=1 // pred_check
      _
    $region59: #{multi_head_attention.1} parent=1 // pred_check_branch
      %923 = sbr.rel (0) target = $region61
    $region60: #{multi_head_attention.1} parent=1 // pred_region
      %925 = dma.done [#allocation4], 256
    $region61: #{multi_head_attention.1} parent=1 // pred_fallthru
      _
    %926 = vsyncpa [#allocation3], 1
    %927 = vsyncpa [#allocation6], 1
    %928 = vsyncpa [#allocation9], 1
    %929 = vsyncpa [#allocation12], 1
    %930 = vsyncpa [#allocation4], 1

</llo_original>
